<compile_context>
chip_gen: v7x
topology: tpu7x:2x2x1
jax: 0.10.0
libtpu: 0.0.40
codegen_flags: <defaults>
</compile_context>

<pallas_src>
import jax
import jax.numpy as jnp
from jax.experimental import pallas as pl
from jax.experimental.pallas import tpu as pltpu

NEG_SLOPE = 0.2                  # LeakyReLU slope
BN_EPS = 1e-5                    # nn.BatchNorm2d default eps
VMEM_LIMIT = 32 * 1024 * 1024    # <= scoped default on v5e / v6e / v7x


# ----------------------------- Pallas kernels -------------------------------

def _matmul_bias_lrelu_kernel(a_ref, w_ref, b_ref, o_ref):
    # o = LeakyReLU(A @ W + b)      (bf16 operands, f32 accumulation)
    y = jnp.dot(a_ref[...], w_ref[...], preferred_element_type=jnp.float32)
    y = y + b_ref[...]
    o_ref[...] = jnp.maximum(y, NEG_SLOPE * y).astype(o_ref.dtype)


def _matmul_bias_stats_kernel(a_ref, w_ref, b_ref, y_ref, s_ref, ss_ref):
    # BatchNorm pass 1 under M tiling: y = A @ W + b, plus this tile's
    # per-channel sum and sum-of-squares (reduced across tiles in the wrapper).
    y = jnp.dot(a_ref[...], w_ref[...], preferred_element_type=jnp.float32)
    y = y + b_ref[...]
    y_ref[...] = y
    s_ref[0] = jnp.sum(y, axis=0, keepdims=True)
    ss_ref[0] = jnp.sum(y * y, axis=0, keepdims=True)


def _bn_lrelu_kernel(y_ref, s_ref, t_ref, o_ref):
    # BatchNorm pass 2: folded affine (y*s + t) + LeakyReLU.
    z = y_ref[...] * s_ref[...] + t_ref[...]
    o_ref[...] = jnp.maximum(z, NEG_SLOPE * z).astype(o_ref.dtype)


def _final_sigmoid_kernel(w_ref, a_ref, b_ref, o_ref):
    # Lane-dense final layer: o[1, M_tile] = sigmoid(w_row @ A^T + b).
    y = jnp.dot(w_ref[...], a_ref[...], preferred_element_type=jnp.float32)
    y = y + b_ref[...]
    p = pl.reciprocal(1.0 + jnp.exp(-y), approx=True)   # divide on the EUP slot
    o_ref[...] = jnp.clip(p, 0.0, 1.0)                  # keep exact [0, 1] range


# --------------------------- tiling / call helpers ---------------------------

def _pick_tile_m(M, target=512):
    """Largest multiple-of-8 divisor of M <= target; prefer >= 2 grid steps."""
    if M % 8 != 0:
        return M
    t = min(target, M)
    t -= t % 8
    while t > 8 and M % t != 0:
        t -= 8
    if M % t != 0:
        t = M
    if t == M and M >= 16:                      # force >= 2 steps (v7x megacore)
        half = (M // 2) - ((M // 2) % 8)
        if half >= 8 and M % half == 0:
            t = half
    return t


def _pick_tile_lanes(M, target=2048):
    """Lane-dense tile for the [1, M] final layer (multiple of 128 if possible)."""
    if M % 128 != 0:
        return M
    t = min(target, M)
    t -= t % 128
    while t > 128 and M % t != 0:
        t -= 128
    if M % t != 0:
        t = M
    return t


def _mosaic_params():
    return pltpu.CompilerParams(dimension_semantics=("parallel",),
                                vmem_limit_bytes=VMEM_LIMIT)


def _conv_lrelu(a, w_mat, bias):
    M, K = a.shape
    N = w_mat.shape[1]
    tm = _pick_tile_m(M)
    cost = pl.CostEstimate(
        flops=2 * M * K * N, transcendentals=0,
        bytes_accessed=a.size * a.dtype.itemsize + w_mat.size * 2 + M * N * 2)
    return pl.pallas_call(
        _matmul_bias_lrelu_kernel,
        out_shape=jax.ShapeDtypeStruct((M, N), jnp.bfloat16),
        grid=(M // tm,),
        in_specs=[pl.BlockSpec((tm, K), lambda i: (i, 0)),
                  pl.BlockSpec((K, N), lambda i: (0, 0)),
                  pl.BlockSpec((1, N), lambda i: (0, 0))],
        out_specs=pl.BlockSpec((tm, N), lambda i: (i, 0)),
        compiler_params=_mosaic_params(),
        cost_estimate=cost,
    )(a, w_mat, bias)


def _conv_bias_stats(a, w_mat, bias):
    M, K = a.shape
    N = w_mat.shape[1]
    tm = _pick_tile_m(M)
    nt = M // tm
    cost = pl.CostEstimate(
        flops=2 * M * K * N, transcendentals=0,
        bytes_accessed=a.size * a.dtype.itemsize + w_mat.size * 2 + M * N * 4)
    return pl.pallas_call(
        _matmul_bias_stats_kernel,
        out_shape=(jax.ShapeDtypeStruct((M, N), jnp.float32),
                   jax.ShapeDtypeStruct((nt, 1, N), jnp.float32),
                   jax.ShapeDtypeStruct((nt, 1, N), jnp.float32)),
        grid=(nt,),
        in_specs=[pl.BlockSpec((tm, K), lambda i: (i, 0)),
                  pl.BlockSpec((K, N), lambda i: (0, 0)),
                  pl.BlockSpec((1, N), lambda i: (0, 0))],
        out_specs=(pl.BlockSpec((tm, N), lambda i: (i, 0)),
                   pl.BlockSpec((1, 1, N), lambda i: (i, 0, 0)),
                   pl.BlockSpec((1, 1, N), lambda i: (i, 0, 0))),
        compiler_params=_mosaic_params(),
        cost_estimate=cost,
    )(a, w_mat, bias)


def _bn_lrelu(y, scale, shift):
    M, N = y.shape
    tm = _pick_tile_m(M)
    cost = pl.CostEstimate(flops=4 * M * N, transcendentals=0,
                           bytes_accessed=M * N * 4 + M * N * 2 + 2 * N * 4)
    return pl.pallas_call(
        _bn_lrelu_kernel,
        out_shape=jax.ShapeDtypeStruct((M, N), jnp.bfloat16),
        grid=(M // tm,),
        in_specs=[pl.BlockSpec((tm, N), lambda i: (i, 0)),
                  pl.BlockSpec((1, N), lambda i: (0, 0)),
                  pl.BlockSpec((1, N), lambda i: (0, 0))],
        out_specs=pl.BlockSpec((tm, N), lambda i: (i, 0)),
        compiler_params=_mosaic_params(),
        cost_estimate=cost,
    )(y, scale.reshape(1, N).astype(jnp.float32),
      shift.reshape(1, N).astype(jnp.float32))


def _final_conv_sigmoid(a_t, w_row, bias):
    K, M = a_t.shape
    tm = _pick_tile_lanes(M)
    cost = pl.CostEstimate(flops=2 * M * K, transcendentals=M,
                           bytes_accessed=a_t.size * 2 + K * 2 + M * 4)
    return pl.pallas_call(
        _final_sigmoid_kernel,
        out_shape=jax.ShapeDtypeStruct((1, M), jnp.float32),
        grid=(M // tm,),
        in_specs=[pl.BlockSpec((1, K), lambda i: (0, 0)),
                  pl.BlockSpec((K, tm), lambda i: (0, i)),
                  pl.BlockSpec((1, 1), lambda i: (0, 0))],
        out_specs=pl.BlockSpec((1, tm), lambda i: (0, i)),
        compiler_params=_mosaic_params(),
        cost_estimate=cost,
    )(w_row, a_t, bias.reshape(1, 1).astype(jnp.float32))


# ------------------------------- JAX glue ------------------------------------

def _im2col(x_nhwc, k, stride, pad):
    """Extract kxk patches; returns ([B*OH*OW, k*k*C], (B, OH, OW))."""
    if pad:
        x_nhwc = jnp.pad(x_nhwc, ((0, 0), (pad, pad), (pad, pad), (0, 0)))
    B, H, W, C = x_nhwc.shape
    OH = (H - k) // stride + 1
    OW = (W - k) // stride + 1
    cols = []
    for kh in range(k):
        for kw in range(k):
            cols.append(x_nhwc[:, kh:kh + OH * stride:stride,
                               kw:kw + OW * stride:stride, :])
    p = jnp.stack(cols, axis=3)                       # [B, OH, OW, k*k, C]
    return p.reshape(B * OH * OW, k * k * C), (B, OH, OW)


def _w_to_mat(w_oihw):
    # PyTorch conv weight [Cout, Cin, KH, KW] -> [KH*KW*Cin, Cout]
    # (matches the (kh, kw) outer / cin inner ordering produced by _im2col).
    cout, cin, kh, kw = w_oihw.shape
    return jnp.transpose(w_oihw, (2, 3, 1, 0)).reshape(kh * kw * cin, cout)


def init_params(key):
    ks = jax.random.split(key, 6)

    def conv(kw_key, kb_key, cout, cin, k):
        w = 0.05 * jax.random.normal(kw_key, (cout, cin, k, k), jnp.float32)
        b = 0.05 * jax.random.normal(kb_key, (cout,), jnp.float32)
        return w, b

    w1, b1 = conv(ks[0], ks[1], 64, 3, 4)
    w2, b2 = conv(ks[2], ks[3], 128, 64, 4)
    w3, b3 = conv(ks[4], ks[5], 1, 128, 4)
    gamma = jnp.ones((128,), jnp.float32)   # BatchNorm2d default affine init
    beta = jnp.zeros((128,), jnp.float32)
    return dict(w1=w1, b1=b1, w2=w2, b2=b2, w3=w3, b3=b3,
                gamma=gamma, beta=beta)


def discriminator_forward(params, x_nchw):
    x = jnp.transpose(x_nchw, (0, 2, 3, 1)).astype(jnp.float32)   # NCHW -> NHWC

    # Pad Cin 3 -> 8 so layer-1 K = 4*4*8 = 128 (full lane tile); matching zero
    # weight rows keep the math identical.
    cin = x.shape[-1]
    cin_pad = 8
    x = jnp.pad(x, ((0, 0), (0, 0), (0, 0), (0, cin_pad - cin)))
    w1 = jnp.pad(params["w1"], ((0, 0), (0, cin_pad - cin), (0, 0), (0, 0)))

    # --- Conv2d(3, 64, 4, 2, 1) + LeakyReLU(0.2) ---
    a1, (B, oh1, ow1) = _im2col(x.astype(jnp.bfloat16), k=4, stride=2, pad=1)
    h1 = _conv_lrelu(a1, _w_to_mat(w1).astype(jnp.bfloat16),
                     params["b1"].reshape(1, -1).astype(jnp.float32))
    h1 = h1.reshape(B, oh1, ow1, 64)

    # --- Conv2d(64, 128, 4, 2, 1) + BatchNorm2d(128) + LeakyReLU(0.2) ---
    # Pass 1: conv + bias, with per-tile channel sum / sumsq for the BN stats.
    a2, (B, oh2, ow2) = _im2col(h1, k=4, stride=2, pad=1)        # bf16
    y2, sums, ssqs = _conv_bias_stats(
        a2, _w_to_mat(params["w2"]).astype(jnp.bfloat16),
        params["b2"].reshape(1, -1).astype(jnp.float32))
    M2 = y2.shape[0]
    ch_sum = jnp.sum(sums, axis=(0, 1))                          # (128,)
    ch_ssq = jnp.sum(ssqs, axis=(0, 1))                          # (128,)
    mean = ch_sum / M2
    var = jnp.maximum(ch_ssq / M2 - mean * mean, 0.0)            # biased (train-mode)
    scale = params["gamma"] * jax.lax.rsqrt(var + BN_EPS)        # folded affine
    shift = params["beta"] - mean * scale
    # Pass 2: y*scale + shift, LeakyReLU.
    h2 = _bn_lrelu(y2, scale, shift).reshape(B, oh2, ow2, 128)

    # --- Conv2d(128, 1, 4, 1, 0) + Sigmoid ---  (lane-dense [1, M] formulation)
    a3, (B, oh3, ow3) = _im2col(h2, k=4, stride=1, pad=0)        # bf16, [M3, 2048]
    a3t = a3.T                                                   # [2048, M3]
    w3_row = _w_to_mat(params["w3"]).astype(jnp.bfloat16).T      # [1, 2048]
    out = _final_conv_sigmoid(a3t, w3_row, params["b3"].astype(jnp.float32))
    out = out[0].reshape(B, oh3, ow3)[:, None, :, :]             # NCHW [B,1,OH,OW]
    return out


if __name__ == "__main__":
    key = jax.random.PRNGKey(0)
    pk, xk = jax.random.split(key)
    params = init_params(pk)
    x = jax.random.normal(xk, (2, 3, 16, 16), jnp.float32)   # NCHW like PyTorch

    out = discriminator_forward(params, x)
    out = jax.block_until_ready(out)

    assert out.shape == (2, 1, 1, 1), out.shape
    assert bool(jnp.all((out >= 0.0) & (out <= 1.0)))        # sigmoid range
    print("KERNEL_OK")
</pallas_src>

<mosaic_0001>
module attributes {stable_mosaic.version = 11 : i64} {
  func.func @_matmul_bias_lrelu_kernel(%arg0: i32, %arg1: memref<64x128xbf16, #tpu.memory_space<vmem>>, %arg2: memref<128x64xbf16, #tpu.memory_space<vmem>>, %arg3: memref<1x64xf32, #tpu.memory_space<vmem>>, %arg4: memref<64x64xbf16, #tpu.memory_space<vmem>>) attributes {dimension_semantics = [#tpu.dimension_semantics<parallel>], iteration_bounds = array<i64: 2>, scalar_prefetch = 0 : i64, scratch_operands = 0 : i64, tpu.core_type = #tpu.core_type<tc>, window_params = [{transform_indices = @transform_0, window_bounds = array<i64: 64, 128>}, {pipeline_mode = #tpu.pipeline_mode<synchronous>, transform_indices = @transform_1, window_bounds = array<i64: 128, 64>}, {pipeline_mode = #tpu.pipeline_mode<synchronous>, transform_indices = @transform_2, window_bounds = array<i64: 1, 64>}, {transform_indices = @transform_3, window_bounds = array<i64: 64, 64>}]} {
    %c0 = arith.constant 0 : index
    %c0_0 = arith.constant 0 : index
    %0 = vector.load %arg1[%c0, %c0_0] : memref<64x128xbf16, #tpu.memory_space<vmem>>, vector<64x128xbf16>
    %c0_1 = arith.constant 0 : index
    %c0_2 = arith.constant 0 : index
    %1 = vector.load %arg2[%c0_1, %c0_2] : memref<128x64xbf16, #tpu.memory_space<vmem>>, vector<128x64xbf16>
    %cst = arith.constant dense<0.000000e+00> : vector<64x64xf32>
    %2 = tpu.matmul %0, %1, %cst {dimension_numbers = #tpu.dot_dimension_numbers<[1], [0], [0], [1], [0, 0, 1, 1], [], []>} : vector<64x128xbf16>, vector<128x64xbf16>, vector<64x64xf32> -> vector<64x64xf32>
    %c0_3 = arith.constant 0 : index
    %c0_4 = arith.constant 0 : index
    %3 = vector.load %arg3[%c0_3, %c0_4] : memref<1x64xf32, #tpu.memory_space<vmem>>, vector<1x64xf32>
    %4 = vector.broadcast %3 : vector<1x64xf32> to vector<64x64xf32>
    %5 = arith.addf %2, %4 : vector<64x64xf32>
    %cst_5 = arith.constant 2.000000e-01 : f32
    %6 = vector.broadcast %cst_5 : f32 to vector<64x64xf32>
    %7 = arith.mulf %6, %5 : vector<64x64xf32>
    %8 = arith.maximumf %5, %7 : vector<64x64xf32>
    %9 = arith.truncf %8 : vector<64x64xf32> to vector<64x64xbf16>
    %c0_6 = arith.constant 0 : index
    %c0_7 = arith.constant 0 : index
    %10 = vector.load %arg4[%c0_6, %c0_7] : memref<64x64xbf16, #tpu.memory_space<vmem>>, vector<64x64xbf16>
    tpu.vector_store %arg4[%c0_6, %c0_7], %9 {strides = array<i32>} : memref<64x64xbf16, #tpu.memory_space<vmem>>, vector<64x64xbf16>,
    return
  }
  func.func @transform_0(%arg0: i32) -> (i32, i32) {
    %c0_i32 = arith.constant 0 : i32
    %c0_i32_0 = arith.constant 0 : i32
    return %arg0, %c0_i32 : i32, i32
  }
  func.func @transform_1(%arg0: i32) -> (i32, i32) {
    %c0_i32 = arith.constant 0 : i32
    %c0_i32_0 = arith.constant 0 : i32
    %c0_i32_1 = arith.constant 0 : i32
    return %c0_i32, %c0_i32_0 : i32, i32
  }
  func.func @transform_2(%arg0: i32) -> (i32, i32) {
    %c0_i32 = arith.constant 0 : i32
    %c0_i32_0 = arith.constant 0 : i32
    %c0_i32_1 = arith.constant 0 : i32
    return %c0_i32, %c0_i32_0 : i32, i32
  }
  func.func @transform_3(%arg0: i32) -> (i32, i32) {
    %c0_i32 = arith.constant 0 : i32
    %c0_i32_0 = arith.constant 0 : i32
    return %arg0, %c0_i32 : i32, i32
  }
}

</mosaic_0001>

<llo_original>
// kernel: tpu_custom_call.1
$region0: #{tpu_custom_call.1}
  #allocation0 [shape = 'u32[]', space=smem, size = 0x4, offset = 0x4, fixed_abs, tag = 'smem constant byte address 0x4 - core index']
  #allocation1 [shape = 'u32[144,128]{1,0:T(1,128)}', space=vmem, size = 0x12000, scoped, tag = 'internal scratch']
  %s0 = inlined_call_operand.vmem [shape: bf16[128,128], index: 0, kind: input, shape index: {}]
  %s1 = inlined_call_operand.vmem [shape: bf16[128,64], index: 1, kind: input, shape index: {}]
  %s2 = inlined_call_operand.vmem [shape: f32[1,64], index: 2, kind: input, shape index: {}]
  %s3 = inlined_call_operand.vmem [shape: bf16[128,64], index: 3, kind: output, shape index: {}]
  %s4 = sld [smem:[#allocation0]]
  $region45: #{tpu_custom_call.1} parent=0
    _
  %s6 = ssub.s32 1, %s4
  %s7 = scalar_select 0, %s6, %s4
  loop: start=0, step=1, limit=4
  $region2: #{tpu_custom_call.1} parent=0 // loop_pre_header
    _
  $region3: #{tpu_custom_call.1} parent=0 // loop_header
    %s9 = sphi 0, %s13
    %p10 = scmp.ge.s32.totalorder %s9, 4
    %s19 = sphi 0, %s21
    %s22 = sphi 0, %s19
    %s23 = sphi 0, %s22
    %s39 = sphi 0, %s23
    %s43 = sphi 0, %s43
    %s45 = sphi 0, %s43
    %s46 = sphi 0, %s45
    %s60 = sphi 0, %s46
    %s64 = sphi 0, %s64
    %s66 = sphi 0, %s64
    %s67 = sphi 0, %s66
    %s81 = sphi 0, %s67
    %s87 = sphi 0, %s89
    %s90 = sphi 0, %s87
    %s91 = sphi 0, %s90
    %s107 = sphi 0, %s91
  $region4: #{tpu_custom_call.1} parent=0 // loop_header_branch
    %12 = sbr.rel (%p10) target = $region8
  $region5: #{tpu_custom_call.1} parent=0 // loop_body
    %s14 = ssub.s32 %s9, 1
    %s15 = ssub.s32 %s9, 2
    %s16 = sadd.s32 %s9, 1
    %s17 = ssub.s32 %s9, %s16
    %p18 = scmp.eq.s32.totalorder %s17, 0
    %s20 = sadd.s32 %s19, 1
    %s21 = scalar_select %p18, %s19, %s20
    %p24 = pneg %p18
    %p25 = scmp.eq.s32.totalorder %s9, 1
    %p26 = por %p24, %p25
    %p27 = scmp.ne.s32.totalorder %s19, %s22
    %p28 = scmp.eq.s32.totalorder %s9, 0
    %p29 = por %p27, %p28
    %p30 = scmp.ne.s32.totalorder %s19, %s22
    %p31 = scmp.eq.s32.totalorder %s14, 1
    %p32 = por %p30, %p31
    %p33 = scmp.ne.s32.totalorder %s22, %s23
    %p34 = scmp.eq.s32.totalorder %s14, 0
    %p35 = por %p33, %p34
    %p36 = scmp.ne.s32.totalorder %s22, %s23
    %p37 = scmp.eq.s32.totalorder %s15, 1
    %p38 = por %p36, %p37
    %p40 = scmp.ne.s32.totalorder %s23, %s39
    %p41 = scmp.eq.s32.totalorder %s15, 0
    %p42 = por %p40, %p41
    %s44 = sadd.s32 %s43, 1
    %p47 = scmp.eq.s32.totalorder %s9, 1
    %p48 = scmp.ne.s32.totalorder %s43, %s45
    %p49 = scmp.eq.s32.totalorder %s9, 0
    %p50 = por %p48, %p49
    %p51 = scmp.ne.s32.totalorder %s43, %s45
    %p52 = scmp.eq.s32.totalorder %s14, 1
    %p53 = por %p51, %p52
    %p54 = scmp.ne.s32.totalorder %s45, %s46
    %p55 = scmp.eq.s32.totalorder %s14, 0
    %p56 = por %p54, %p55
    %p57 = scmp.ne.s32.totalorder %s45, %s46
    %p58 = scmp.eq.s32.totalorder %s15, 1
    %p59 = por %p57, %p58
    %p61 = scmp.ne.s32.totalorder %s46, %s60
    %p62 = scmp.eq.s32.totalorder %s15, 0
    %p63 = por %p61, %p62
    %s65 = sadd.s32 %s64, 1
    %p68 = scmp.eq.s32.totalorder %s9, 1
    %p69 = scmp.ne.s32.totalorder %s64, %s66
    %p70 = scmp.eq.s32.totalorder %s9, 0
    %p71 = por %p69, %p70
    %p72 = scmp.ne.s32.totalorder %s64, %s66
    %p73 = scmp.eq.s32.totalorder %s14, 1
    %p74 = por %p72, %p73
    %p75 = scmp.ne.s32.totalorder %s66, %s67
    %p76 = scmp.eq.s32.totalorder %s14, 0
    %p77 = por %p75, %p76
    %p78 = scmp.ne.s32.totalorder %s66, %s67
    %p79 = scmp.eq.s32.totalorder %s15, 1
    %p80 = por %p78, %p79
    %p82 = scmp.ne.s32.totalorder %s67, %s81
    %p83 = scmp.eq.s32.totalorder %s15, 0
    %p84 = por %p82, %p83
    %s85 = ssub.s32 %s9, %s16
    %p86 = scmp.eq.s32.totalorder %s85, 0
    %s88 = sadd.s32 %s87, 1
    %s89 = scalar_select %p86, %s87, %s88
    %p92 = pneg %p86
    %p93 = scmp.eq.s32.totalorder %s9, 1
    %p94 = por %p92, %p93
    %p95 = scmp.ne.s32.totalorder %s87, %s90
    %p96 = scmp.eq.s32.totalorder %s9, 0
    %p97 = por %p95, %p96
    %p98 = scmp.ne.s32.totalorder %s87, %s90
    %p99 = scmp.eq.s32.totalorder %s14, 1
    %p100 = por %p98, %p99
    %p101 = scmp.ne.s32.totalorder %s90, %s91
    %p102 = scmp.eq.s32.totalorder %s14, 0
    %p103 = por %p101, %p102
    %p104 = scmp.ne.s32.totalorder %s90, %s91
    %p105 = scmp.eq.s32.totalorder %s15, 1
    %p106 = por %p104, %p105
    %p108 = scmp.ne.s32.totalorder %s91, %s107
    %p109 = scmp.eq.s32.totalorder %s15, 0
    %p110 = por %p108, %p109
    %p111 = scmp.le.s32.totalorder 1, %s9
    %p112 = scmp.lt.s32.totalorder %s9, 3
    %p113 = pnand %p111, %p112
    %p114 = pneg %p113
    // Predicated region
    $region9: #{tpu_custom_call.1} parent=5 // pred_check
      _
    $region10: #{tpu_custom_call.1} parent=5 // pred_check_branch
      %116 = sbr.rel (%p113) target = $region12
    $region11: #{tpu_custom_call.1} parent=5 // pred_region
      %s117 = ssub.s32 %s9, 1
      // Predicated region
      $region13: #{tpu_custom_call.1} parent=11 // pred_check
        %p118 = pneg %p56
      $region14: #{tpu_custom_call.1} parent=11 // pred_check_branch
        %120 = sbr.rel (%p118) target = $region16
      $region15: #{tpu_custom_call.1} parent=11 // pred_region
        _
      $region16: #{tpu_custom_call.1} parent=11 // pred_fallthru
        _
      // Predicated region
      $region17: #{tpu_custom_call.1} parent=11 // pred_check
        %p121 = pneg %p77
      $region18: #{tpu_custom_call.1} parent=11 // pred_check_branch
        %123 = sbr.rel (%p121) target = $region20
      $region19: #{tpu_custom_call.1} parent=11 // pred_region
        _
      $region20: #{tpu_custom_call.1} parent=11 // pred_fallthru
        _
    $region12: #{tpu_custom_call.1} parent=5 // pred_fallthru
      _
    %p124 = scmp.lt.s32.totalorder %s9, 2
    // Predicated region
    $region21: #{tpu_custom_call.1} parent=5 // pred_check
      %p125 = pneg %p124
    $region22: #{tpu_custom_call.1} parent=5 // pred_check_branch
      %127 = sbr.rel (%p125) target = $region24
    $region23: #{tpu_custom_call.1} parent=5 // pred_region
      // Predicated region
      $region25: #{tpu_custom_call.1} parent=23 // pred_check
        %p128 = pneg %p29
      $region26: #{tpu_custom_call.1} parent=23 // pred_check_branch
        %130 = sbr.rel (%p128) target = $region28
      $region27: #{tpu_custom_call.1} parent=23 // pred_region
        %s131 = smul.u32 8, %s9
        %p132 = scmp.lt.s32.totalorder %s131, 15
        %s133 = scalar_select %p132, %s131, 15
        %s134 = smul.addr %s133, 4
        %s135 = scalar_lea.vmem %s0, %s134
        %s136 = smul.u32 8, %s9
      $region28: #{tpu_custom_call.1} parent=23 // pred_fallthru
        _
    $region24: #{tpu_custom_call.1} parent=5 // pred_fallthru
      _
    %p137 = scmp.le.s32.totalorder 1, %s9
    %p138 = scmp.lt.s32.totalorder %s9, 3
    %p139 = pnand %p137, %p138
    %p140 = pneg %p139
    // Predicated region
    $region29: #{tpu_custom_call.1} parent=5 // pred_check
      _
    $region30: #{tpu_custom_call.1} parent=5 // pred_check_branch
      %142 = sbr.rel (%p139) target = $region32
    $region31: #{tpu_custom_call.1} parent=5 // pred_region
      %s143 = ssub.s32 %s9, 1
      %s144 = smul.u32 8, %s14
      %p145 = scmp.lt.s32.totalorder %s144, 15
      %s146 = scalar_select %p145, %s144, 15
      %s147 = smul.addr %s146, 4
      %s148 = scalar_lea.vmem %s0, %s147
      %p149 = pneg %p35
      %p150 = pneg %p32
      %p151 = pneg %p56
      %p152 = pneg %p53
      %p153 = pneg %p77
      %p154 = pneg %p74
      %p155 = pneg %p103
      %p156 = pneg %p100
      %s157 = smul.u32 8, %s14
      %p158 = scmp.lt.s32.totalorder %s157, 15
      %s159 = scalar_select %p158, %s157, 15
      %s160 = smul.addr %s159, 4
      %s161 = scalar_lea.vmem %s3, %s160
      %s162 = smul.u32 8, %s14
      %p163 = scmp.lt.s32.totalorder %s162, 15
      %s164 = scalar_select %p163, %s162, 15
      %s165 = smul.addr %s164, 4
      %s166 = scalar_lea.vmem %s0, %s165
      %s167 = smul.u32 8, %s14
      %s168 = smul.u32 8, %s14
      %p169 = scmp.lt.s32.totalorder %s168, 15
      %s170 = scalar_select %p169, %s168, 15
      %s171 = smul.addr %s170, 4
      %s172 = scalar_lea.vmem %s3, %s171
      %s173 = smul.u32 8, %s14
      %v175 = vld [vmem:[%s166] sm:$0xf]
      %v176 = vld [vmem:[%s166 + $0x4] sm:$0xf]
      %v177 = vld [vmem:[%s166 + $0x8] sm:$0xf]
      %v178 = vld [vmem:[%s166 + $0xc] sm:$0xf]
      %v179 = vld [vmem:[%s166 + $0x10] sm:$0xf]
      %v180 = vld [vmem:[%s166 + $0x14] sm:$0xf]
      %v181 = vld [vmem:[%s166 + $0x18] sm:$0xf]
      %v182 = vld [vmem:[%s166 + $0x1c] sm:$0xf]
      %v183 = vld [vmem:[%s1] sm:$0xf]
      %v184 = vld [vmem:[%s1 + $0x4] sm:$0xf]
      %v185 = vld [vmem:[%s1 + $0x8] sm:$0xf]
      %v186 = vld [vmem:[%s1 + $0xc] sm:$0xf]
      %v187 = vld [vmem:[%s1 + $0x10] sm:$0xf]
      %v188 = vld [vmem:[%s1 + $0x14] sm:$0xf]
      %v189 = vld [vmem:[%s1 + $0x18] sm:$0xf]
      %v190 = vld [vmem:[%s1 + $0x1c] sm:$0xf]
      %v191 = vld [vmem:[%s1 + $0x20] sm:$0xf]
      %v192 = vld [vmem:[%s1 + $0x24] sm:$0xf]
      %v193 = vld [vmem:[%s1 + $0x28] sm:$0xf]
      %v194 = vld [vmem:[%s1 + $0x2c] sm:$0xf]
      %v195 = vld [vmem:[%s1 + $0x30] sm:$0xf]
      %v196 = vld [vmem:[%s1 + $0x34] sm:$0xf]
      %v197 = vld [vmem:[%s1 + $0x38] sm:$0xf]
      %v198 = vld [vmem:[%s1 + $0x3c] sm:$0xf]
      %v199 = vld [vmem:[%s2] sm:$0x1]
      %v201 = vlaneseq
      %v202 = vshrl.u32 %v201, 7
      %v203 = vsub.s32 0, %v202
      %v204 = vrot.slane %v199, %v203
      %v214 = vunpack.c.l.b16 %v175
      %v215 = vunpack.c.l.b16 %v176
      %v216 = vunpack.c.l.b16 %v177
      %v217 = vunpack.c.l.b16 %v178
      %v218 = vunpack.c.l.b16 %v179
      %v219 = vunpack.c.l.b16 %v180
      %v220 = vunpack.c.l.b16 %v181
      %v221 = vunpack.c.l.b16 %v182
      %v222 = vpack.c.b16 %v215, %v214
      %v223 = vpack.c.b16 %v217, %v216
      %v224 = vpack.c.b16 %v219, %v218
      %v225 = vpack.c.b16 %v221, %v220
      %v246 = vunpack.c.l.b16 %v183
      %v247 = vunpack.c.l.b16 %v184
      %v248 = vunpack.c.l.b16 %v185
      %v249 = vunpack.c.l.b16 %v186
      %v250 = vunpack.c.l.b16 %v187
      %v251 = vunpack.c.l.b16 %v188
      %v252 = vunpack.c.l.b16 %v189
      %v253 = vunpack.c.l.b16 %v190
      %v254 = vunpack.c.l.b16 %v191
      %v255 = vunpack.c.l.b16 %v192
      %v256 = vunpack.c.l.b16 %v193
      %v257 = vunpack.c.l.b16 %v194
      %v258 = vunpack.c.l.b16 %v195
      %v259 = vunpack.c.l.b16 %v196
      %v260 = vunpack.c.l.b16 %v197
      %v261 = vunpack.c.l.b16 %v198
      %v262 = vpack.c.b16 %v247, %v246
      %v263 = vpack.c.b16 %v249, %v248
      %v264 = vpack.c.b16 %v251, %v250
      %v265 = vpack.c.b16 %v253, %v252
      %v266 = vpack.c.b16 %v255, %v254
      %v267 = vpack.c.b16 %v257, %v256
      %v268 = vpack.c.b16 %v259, %v258
      %v269 = vpack.c.b16 %v261, %v260
      %278 = vmatprep.subr.bf16.mxu0 0
      %279 = vmatpush1.bf16.msra.mxu0 %v262
      %280 = vmatprep.subr.bf16.mxu0 0
      %281 = vmatpush1.bf16.msra.mxu0 %v263
      %282 = vmatprep.subr.bf16.mxu0 0
      %283 = vmatpush1.bf16.msra.mxu0 %v264
      %284 = vmatprep.subr.bf16.mxu0 0
      %285 = vmatpush1.bf16.msra.mxu0 %v265
      %286 = vmatprep.subr.bf16.mxu0 0
      %287 = vmatpush1.bf16.msra.mxu0 %v266
      %288 = vmatprep.subr.bf16.mxu0 0
      %289 = vmatpush1.bf16.msra.mxu0 %v267
      %290 = vmatprep.subr.bf16.mxu0 0
      %291 = vmatpush1.bf16.msra.mxu0 %v268
      %292 = vmatprep.subr.bf16.mxu0 0
      %293 = vmatpush1.bf16.msra.mxu0 %v269
      %294 = vmatprep.subr.bf16.mxu0 0
      %295 = vmatpush1.bf16.msra.mxu0 0
      %296 = vmatprep.subr.bf16.mxu0 0
      %297 = vmatpush1.bf16.msra.mxu0 0
      %298 = vmatprep.subr.bf16.mxu0 0
      %299 = vmatpush1.bf16.msra.mxu0 0
      %300 = vmatprep.subr.bf16.mxu0 0
      %301 = vmatpush1.bf16.msra.mxu0 0
      %302 = vmatprep.subr.bf16.mxu0 0
      %303 = vmatpush1.bf16.msra.mxu0 0
      %304 = vmatprep.subr.bf16.mxu0 0
      %305 = vmatpush1.bf16.msra.mxu0 0
      %306 = vmatprep.subr.bf16.mxu0 0
      %307 = vmatpush1.bf16.msra.mxu0 0
      %308 = vmatprep.subr.bf16.mxu0 0
      %309 = vmatpush1.bf16.msra.mxu0 0
      %310 = vmatprep.mubr.bf16.mxu0 0
      %311 = vmatmul.mubr.bf16.gmra.mrb[0].mxu0 %v222
      %v312 = vpop.f32.mrb[0].mxu0
      %v313 = vadd.f32 %v204, %v312
      %v314 = vpop.f32.mrb[0].mxu0
      %v315 = vpop.f32.mrb[0].mxu0
      %v316 = vadd.f32 %v204, %v315
      %v317 = vpop.f32.mrb[0].mxu0
      %318 = vmatprep.mubr.bf16.mxu0 0
      %319 = vmatmul.mubr.bf16.gmra.mrb[0].mxu0 %v223
      %v320 = vpop.f32.mrb[0].mxu0
      %v321 = vadd.f32 %v204, %v320
      %v322 = vpop.f32.mrb[0].mxu0
      %v323 = vpop.f32.mrb[0].mxu0
      %v324 = vadd.f32 %v204, %v323
      %v325 = vpop.f32.mrb[0].mxu0
      %326 = vmatprep.mubr.bf16.mxu0 0
      %327 = vmatmul.mubr.bf16.gmra.mrb[0].mxu0 %v224
      %v328 = vpop.f32.mrb[0].mxu0
      %v329 = vadd.f32 %v204, %v328
      %v330 = vpop.f32.mrb[0].mxu0
      %v331 = vpop.f32.mrb[0].mxu0
      %v332 = vadd.f32 %v204, %v331
      %v333 = vpop.f32.mrb[0].mxu0
      %334 = vmatprep.mubr.bf16.mxu0 0
      %335 = vmatmul.mubr.bf16.gmra.mrb[0].mxu0 %v225
      %v336 = vpop.f32.mrb[0].mxu0
      %v337 = vadd.f32 %v204, %v336
      %v338 = vpop.f32.mrb[0].mxu0
      %v339 = vpop.f32.mrb[0].mxu0
      %v340 = vadd.f32 %v204, %v339
      %v341 = vpop.f32.mrb[0].mxu0
      %342 = vdwg.mxu0
      %v343 = vmul.f32 %v313, 0.2
      %v344 = vmul.f32 %v316, 0.2
      %v345 = vmul.f32 %v321, 0.2
      %v346 = vmul.f32 %v324, 0.2
      %v347 = vmul.f32 %v329, 0.2
      %v348 = vmul.f32 %v332, 0.2
      %v349 = vmul.f32 %v337, 0.2
      %v350 = vmul.f32 %v340, 0.2
      %v351 = vmax.f32 %v313, %v343
      %v352 = vmax.f32 %v316, %v344
      %v353 = vmax.f32 %v321, %v345
      %v354 = vmax.f32 %v324, %v346
      %v355 = vmax.f32 %v329, %v347
      %v356 = vmax.f32 %v332, %v348
      %v357 = vmax.f32 %v337, %v349
      %v358 = vmax.f32 %v340, %v350
      %v359 = vpack.c.bf16 %v352, %v351
      %v360 = vpack.c.bf16 %v354, %v353
      %v361 = vpack.c.bf16 %v356, %v355
      %v362 = vpack.c.bf16 %v358, %v357
      %v367 = vunpack.c.l.b16 %v359
      %v368 = vunpack.c.h.b16 %v359
      %v369 = vunpack.c.l.b16 %v360
      %v370 = vunpack.c.h.b16 %v360
      %v371 = vunpack.c.l.b16 %v361
      %v372 = vunpack.c.h.b16 %v361
      %v373 = vunpack.c.l.b16 %v362
      %v374 = vunpack.c.h.b16 %v362
      %v375 = vpack.c.b16 %v367, %v367
      %v376 = vpack.c.b16 %v368, %v368
      %v377 = vpack.c.b16 %v369, %v369
      %v378 = vpack.c.b16 %v370, %v370
      %v379 = vpack.c.b16 %v371, %v371
      %v380 = vpack.c.b16 %v372, %v372
      %v381 = vpack.c.b16 %v373, %v373
      %v382 = vpack.c.b16 %v374, %v374
      %vm391 = vcmask 519168
      %392 = vst.msk [vmem:[%s172] sm:$0xf] %vm391, %v375
      %393 = vst.msk [vmem:[%s172 + $0x4] sm:$0xf] %vm391, %v376
      %394 = vst.msk [vmem:[%s172 + $0x8] sm:$0xf] %vm391, %v377
      %395 = vst.msk [vmem:[%s172 + $0xc] sm:$0xf] %vm391, %v378
      %396 = vst.msk [vmem:[%s172 + $0x10] sm:$0xf] %vm391, %v379
      %397 = vst.msk [vmem:[%s172 + $0x14] sm:$0xf] %vm391, %v380
      %398 = vst.msk [vmem:[%s172 + $0x18] sm:$0xf] %vm391, %v381
      %399 = vst.msk [vmem:[%s172 + $0x1c] sm:$0xf] %vm391, %v382
      %s400 = smul.u32 8, %s14
      %p401 = scmp.lt.s32.totalorder %s400, 15
      %s402 = scalar_select %p401, %s400, 15
      %s403 = smul.addr %s402, 4
      %s404 = scalar_lea.vmem %s3, %s403
      // Predicated region
      $region33: #{tpu_custom_call.1} parent=31 // pred_check
        %p405 = pneg %p100
      $region34: #{tpu_custom_call.1} parent=31 // pred_check_branch
        %407 = sbr.rel (%p405) target = $region36
      $region35: #{tpu_custom_call.1} parent=31 // pred_region
        %s408 = smul.u32 8, %s14
      $region36: #{tpu_custom_call.1} parent=31 // pred_fallthru
        _
    $region32: #{tpu_custom_call.1} parent=5 // pred_fallthru
      _
    %p409 = scmp.le.s32.totalorder 2, %s9
    // Predicated region
    $region37: #{tpu_custom_call.1} parent=5 // pred_check
      %p410 = pneg %p409
    $region38: #{tpu_custom_call.1} parent=5 // pred_check_branch
      %412 = sbr.rel (%p410) target = $region40
    $region39: #{tpu_custom_call.1} parent=5 // pred_region
      %s413 = ssub.s32 %s9, 2
      // Predicated region
      $region41: #{tpu_custom_call.1} parent=39 // pred_check
        %p414 = pneg %p106
      $region42: #{tpu_custom_call.1} parent=39 // pred_check_branch
        %416 = sbr.rel (%p414) target = $region44
      $region43: #{tpu_custom_call.1} parent=39 // pred_region
        %s417 = smul.u32 8, %s15
        %p418 = scmp.lt.s32.totalorder %s417, 15
        %s419 = scalar_select %p418, %s417, 15
        %s420 = smul.addr %s419, 4
        %s421 = scalar_lea.vmem %s3, %s420
      $region44: #{tpu_custom_call.1} parent=39 // pred_fallthru
        _
    $region40: #{tpu_custom_call.1} parent=5 // pred_fallthru
      _
  $region6: #{tpu_custom_call.1} parent=0 // loop_footer
    %s13 = sadd.s32 1, %s9
  $region7: #{tpu_custom_call.1} parent=0 // loop_footer_branch
    %8 = sbr.rel target = $region3
  $region8: #{tpu_custom_call.1} parent=0 // loop_exit
    _

</llo_original>
